<compile_context>
chip_gen: v6e
topology: v6e:2x2x1
jax: 0.10.0
libtpu: 0.0.40
codegen_flags: <defaults>
</compile_context>

<pallas_src>
import jax
import jax.numpy as jnp
from jax.experimental import pallas as pl
from jax.experimental.pallas import tpu as pltpu


def _round_up(x: int, m: int) -> int:
    return (x + m - 1) // m * m


def _pick_tile(padded_dim: int, target: int) -> int:
    """Largest multiple of 128 <= target that divides padded_dim (a 128-multiple)."""
    t = min(target, padded_dim)
    t = (t // 128) * 128
    while t > 128 and padded_dim % t != 0:
        t -= 128
    return max(t, 128)


# ---------------------------------------------------------------------------
# Kernels
# ---------------------------------------------------------------------------
def _linear_kernel_multi_k(x_ref, w_ref, b_ref, o_ref, acc_ref):
    # x_ref: (tm, tk) bf16   w_ref: (tk, tn) bf16   b_ref: (1, tn) f32
    # o_ref: (tm, tn) f32    acc_ref: (tm, tn) f32 scratch (lives across K)
    k = pl.program_id(2)

    @pl.when(k == 0)
    def _init():
        # Fold the bias into the accumulator init -> no add in finalize.
        acc_ref[...] = jnp.broadcast_to(
            b_ref[...].astype(jnp.float32), acc_ref.shape
        )

    acc_ref[...] += jnp.dot(
        x_ref[...], w_ref[...], preferred_element_type=jnp.float32
    )

    @pl.when(k == pl.num_programs(2) - 1)
    def _finalize():
        o_ref[...] = acc_ref[...].astype(o_ref.dtype)


def _linear_kernel_single_k(x_ref, w_ref, b_ref, o_ref):
    # Whole K in one shot: no VMEM accumulator round-trip, fully parallel grid.
    acc = jnp.dot(x_ref[...], w_ref[...], preferred_element_type=jnp.float32)
    o_ref[...] = (acc + b_ref[...].astype(jnp.float32)).astype(o_ref.dtype)


# ---------------------------------------------------------------------------
# Parameter preparation (done ONCE, hoisted out of the per-call path)
# ---------------------------------------------------------------------------
def prepare_linear_params(weight, bias, *, param_dtype=jnp.bfloat16):
    """Pre-transpose + zero-pad nn.Linear params for the kernel.

    weight: [n_embedding, in_features] (PyTorch layout)
    bias:   [n_embedding]
    Returns (w_t_padded [Kp, Np] param_dtype, bias_padded [1, Np] f32, (IN, OUT)).
    """
    OUT, IN = weight.shape
    Kp = _round_up(IN, 128)
    Np = _round_up(OUT, 128)

    w_t = weight.T.astype(param_dtype)  # [IN, OUT]
    if (Kp, Np) != (IN, OUT):
        w_t = jnp.pad(w_t, ((0, Kp - IN), (0, Np - OUT)))

    b = bias.astype(jnp.float32)
    if Np != OUT:
        b = jnp.pad(b, (0, Np - OUT))

    return w_t, b.reshape(1, Np), (IN, OUT)


# ---------------------------------------------------------------------------
# Forward
# ---------------------------------------------------------------------------
def embedding_forward(
    x,
    w_t_padded,
    bias_padded,
    orig_shapes,
    *,
    tm=512,
    tn=512,
    tk=1024,
    out_dtype=jnp.float32,
    vmem_budget_bytes=40 * 1024 * 1024,  # conservative: fits v7x 64 MiB VMEM
):
    """y = x @ W^T + b via a tiled Pallas matmul kernel.

    x:           [B, in_features]  (any float dtype; cast to bf16 internally)
    w_t_padded:  [Kp, Np]          from prepare_linear_params (bf16)
    bias_padded: [1, Np]           f32
    returns:     [B, n_embedding]  f32
    """
    IN, OUT = orig_shapes
    B = x.shape[0]
    assert x.shape[1] == IN
    Kp, Np = w_t_padded.shape
    compute_dtype = w_t_padded.dtype

    # --- tile selection (sublane mult-of-8 rows, lane mult-of-128 cols) -----
    tm = min(tm, _round_up(B, 8))
    tn = _pick_tile(Np, tn)
    tk = _pick_tile(Kp, tk)

    # Give the second v7x TensorCore work if the grid would otherwise be 1x1.
    if (_round_up(B, tm) // tm == 1) and (Np // tn == 1) and Np >= 256:
        tn = _pick_tile(Np, Np // 2)

    # --- VMEM budget (double-buffered inputs/outputs + f32 accumulator) -----
    in_sz = jnp.dtype(compute_dtype).itemsize
    out_sz = jnp.dtype(out_dtype).itemsize

    def _tile_bytes(tm_, tn_, tk_):
        return (
            2 * (tm_ * tk_ + tk_ * tn_) * in_sz  # x, w (double-buffered)
            + 2 * tn_ * 4                        # bias (f32)
            + 2 * tm_ * tn_ * out_sz             # out (double-buffered)
            + tm_ * tn_ * 4                      # f32 accumulator
        )

    while _tile_bytes(tm, tn, tk) > vmem_budget_bytes and tk > 128:
        tk = _pick_tile(Kp, tk - 128)
    while _tile_bytes(tm, tn, tk) > vmem_budget_bytes and tn > 128:
        tn = _pick_tile(Np, tn - 128)
    while _tile_bytes(tm, tn, tk) > vmem_budget_bytes and tm > 8:
        tm = max(8, tm // 2)

    Bp = _round_up(B, tm)
    n_i, n_j, n_k = Bp // tm, Np // tn, Kp // tk

    # --- only the (small) activation is padded per call ----------------------
    x_c = x.astype(compute_dtype)
    if Bp != B or Kp != IN:
        x_c = jnp.pad(x_c, ((0, Bp - B), (0, Kp - IN)))

    cost = pl.CostEstimate(
        flops=2 * Bp * Kp * Np,
        transcendentals=0,
        bytes_accessed=(n_j * Bp * Kp + n_i * Kp * Np) * in_sz
        + (Np + Bp * Np) * out_sz,
    )
    cparams = pltpu.CompilerParams(
        dimension_semantics=(
            ("parallel", "parallel", "arbitrary") if n_k > 1
            else ("parallel", "parallel")
        ),
        vmem_limit_bytes=max(_tile_bytes(tm, tn, tk) + (8 << 20), 32 << 20),
    )

    if n_k == 1:
        # Fast path: single K step -> no scratch, no reduction axis.
        out_p = pl.pallas_call(
            _linear_kernel_single_k,
            out_shape=jax.ShapeDtypeStruct((Bp, Np), out_dtype),
            grid_spec=pltpu.PrefetchScalarGridSpec(
                num_scalar_prefetch=0,
                grid=(n_i, n_j),
                in_specs=[
                    pl.BlockSpec((tm, tk), lambda i, j: (i, 0)),
                    pl.BlockSpec((tk, tn), lambda i, j: (0, j)),
                    pl.BlockSpec((1, tn), lambda i, j: (0, j)),
                ],
                out_specs=pl.BlockSpec((tm, tn), lambda i, j: (i, j)),
            ),
            compiler_params=cparams,
            cost_estimate=cost,
        )(x_c, w_t_padded, bias_padded)
    else:
        out_p = pl.pallas_call(
            _linear_kernel_multi_k,
            out_shape=jax.ShapeDtypeStruct((Bp, Np), out_dtype),
            grid_spec=pltpu.PrefetchScalarGridSpec(
                num_scalar_prefetch=0,
                grid=(n_i, n_j, n_k),
                in_specs=[
                    pl.BlockSpec((tm, tk), lambda i, j, k: (i, k)),
                    pl.BlockSpec((tk, tn), lambda i, j, k: (k, j)),
                    pl.BlockSpec((1, tn), lambda i, j, k: (0, j)),
                ],
                out_specs=pl.BlockSpec((tm, tn), lambda i, j, k: (i, j)),
                scratch_shapes=[pltpu.VMEM((tm, tn), jnp.float32)],
            ),
            compiler_params=cparams,
            cost_estimate=cost,
        )(x_c, w_t_padded, bias_padded)

    return out_p[:B, :OUT]


if __name__ == "__main__":
    # Small shapes implied by the module: in_features=32, n_embedding=64, batch=8.
    batch, in_features, n_embedding = 8, 32, 64

    key = jax.random.PRNGKey(0)
    kx, kw, kb = jax.random.split(key, 3)

    x = jax.random.normal(kx, (batch, in_features), dtype=jnp.float32)

    # Deterministic init mimicking nn.Linear's uniform(-1/sqrt(in), 1/sqrt(in)).
    bound = 1.0 / (in_features ** 0.5)
    # PyTorch stores W as [n_embedding, in_features].
    weight = jax.random.uniform(
        kw, (n_embedding, in_features), minval=-bound, maxval=bound, dtype=jnp.float32
    )
    bias = jax.random.uniform(
        kb, (n_embedding,), minval=-bound, maxval=bound, dtype=jnp.float32
    )

    # One-time parameter prep (padding + transpose + bf16 cast hoisted here).
    w_t_p, b_p, shapes = prepare_linear_params(weight, bias)

    out = embedding_forward(x, w_t_p, b_p, shapes)
    out = jax.block_until_ready(out)
    assert out.shape == (batch, n_embedding)

    # Reference at the same precision the kernel uses (bf16 inputs, f32 accum).
    ref_bf16 = (
        x.astype(jnp.bfloat16).astype(jnp.float32)
        @ weight.T.astype(jnp.bfloat16).astype(jnp.float32)
        + bias[None, :]
    )
    assert jnp.allclose(out, ref_bf16, atol=1e-3, rtol=1e-3)

    # Looser check against the full-f32 PyTorch-equivalent forward.
    ref_f32 = x @ weight.T + bias[None, :]
    assert jnp.allclose(out, ref_f32, atol=3e-2, rtol=3e-2)

    print("KERNEL_OK")
</pallas_src>

<mosaic_0001>
module attributes {stable_mosaic.version = 11 : i64} {
  func.func @_linear_kernel_single_k(%arg0: i32, %arg1: i32, %arg2: memref<8x128xbf16, #tpu.memory_space<vmem>>, %arg3: memref<128x128xbf16, #tpu.memory_space<vmem>>, %arg4: memref<1x128xf32, #tpu.memory_space<vmem>>, %arg5: memref<8x128xf32, #tpu.memory_space<vmem>>) attributes {dimension_semantics = [#tpu.dimension_semantics<parallel>, #tpu.dimension_semantics<parallel>], iteration_bounds = array<i64: 1, 1>, scalar_prefetch = 0 : i64, scratch_operands = 0 : i64, tpu.core_type = #tpu.core_type<tc>, window_params = [{transform_indices = @transform_0, window_bounds = array<i64: 8, 128>}, {transform_indices = @transform_1, window_bounds = array<i64: 128, 128>}, {transform_indices = @transform_2, window_bounds = array<i64: 1, 128>}, {transform_indices = @transform_3, window_bounds = array<i64: 8, 128>}]} {
    %c0 = arith.constant 0 : index
    %c0_0 = arith.constant 0 : index
    %0 = vector.load %arg2[%c0, %c0_0] : memref<8x128xbf16, #tpu.memory_space<vmem>>, vector<8x128xbf16>
    %c0_1 = arith.constant 0 : index
    %c0_2 = arith.constant 0 : index
    %1 = vector.load %arg3[%c0_1, %c0_2] : memref<128x128xbf16, #tpu.memory_space<vmem>>, vector<128x128xbf16>
    %cst = arith.constant dense<0.000000e+00> : vector<8x128xf32>
    %2 = tpu.matmul %0, %1, %cst {dimension_numbers = #tpu.dot_dimension_numbers<[1], [0], [0], [1], [0, 0, 1, 1], [], []>} : vector<8x128xbf16>, vector<128x128xbf16>, vector<8x128xf32> -> vector<8x128xf32>
    %c0_3 = arith.constant 0 : index
    %c0_4 = arith.constant 0 : index
    %3 = vector.load %arg4[%c0_3, %c0_4] : memref<1x128xf32, #tpu.memory_space<vmem>>, vector<1x128xf32>
    %4 = vector.broadcast %3 : vector<1x128xf32> to vector<8x128xf32>
    %5 = arith.addf %2, %4 : vector<8x128xf32>
    %c0_5 = arith.constant 0 : index
    %c0_6 = arith.constant 0 : index
    %6 = vector.load %arg5[%c0_5, %c0_6] : memref<8x128xf32, #tpu.memory_space<vmem>>, vector<8x128xf32>
    tpu.vector_store %arg5[%c0_5, %c0_6], %5 {strides = array<i32>} : memref<8x128xf32, #tpu.memory_space<vmem>>, vector<8x128xf32>,
    return
  }
  func.func @transform_0(%arg0: i32, %arg1: i32) -> (i32, i32) {
    %c0_i32 = arith.constant 0 : i32
    %c0_i32_0 = arith.constant 0 : i32
    return %arg0, %c0_i32 : i32, i32
  }
  func.func @transform_1(%arg0: i32, %arg1: i32) -> (i32, i32) {
    %c0_i32 = arith.constant 0 : i32
    %c0_i32_0 = arith.constant 0 : i32
    return %c0_i32, %arg1 : i32, i32
  }
  func.func @transform_2(%arg0: i32, %arg1: i32) -> (i32, i32) {
    %c0_i32 = arith.constant 0 : i32
    %c0_i32_0 = arith.constant 0 : i32
    return %c0_i32, %arg1 : i32, i32
  }
  func.func @transform_3(%arg0: i32, %arg1: i32) -> (i32, i32) {
    %c0_i32 = arith.constant 0 : i32
    return %arg0, %arg1 : i32, i32
  }
}

</mosaic_0001>

<llo_original>
// kernel: tpu_custom_call.1
$region0: #{tpu_custom_call.1}
  #allocation0 [shape = 'u32[]', space=smem, size = 0x4, offset = 0x4, fixed_abs, tag = 'smem constant byte address 0x4 - core index']
  #allocation1 [shape = 'u32[144,128]{1,0:T(1,128)}', space=vmem, size = 0x12000, scoped, tag = 'internal scratch']
  %s0 = inlined_call_operand.hbm [shape: bf16[8,128], index: 0, kind: input, shape index: {}]
  %s1 = inlined_call_operand.hbm [shape: bf16[128,128], index: 1, kind: input, shape index: {}]
  %s2 = inlined_call_operand.vmem [shape: f32[1,128], index: 2, kind: input, shape index: {}]
  %s3 = inlined_call_operand.hbm [shape: f32[8,128], index: 3, kind: output, shape index: {}]
  %s4 = sld [smem:[#allocation0]]
  $region30: #{tpu_custom_call.1} parent=0
    _
  %s6 = ssub.s32 1, %s4
  %s7 = scalar_select 0, %s6, %s4
  $region1: #{tpu_custom_call.1} parent=0
    #allocation2 [shape = 'u8[2048]{0}', space=vmem, size = 0x800, scoped, tag = 'input window, operand 0, single buffered']
    #allocation3 [shape = 's32[1]{0}', space=sflag, size = 0x4, scoped, tag = 'scoped memory for tpu_custom_call.1']
    #allocation4 [shape = 's32[1]{0}', space=sflag, size = 0x4, scoped, tag = 'scoped memory for tpu_custom_call.1']
    #allocation5 [shape = 'u8[32768]{0}', space=vmem, size = 0x8000, scoped, tag = 'input window, operand 1, single buffered']
    #allocation6 [shape = 's32[1]{0}', space=sflag, size = 0x4, scoped, tag = 'scoped memory for tpu_custom_call.1']
    #allocation7 [shape = 'u8[4096]{0}', space=vmem, size = 0x1000, scoped, tag = 'output window, operand 0, single buffered']
    %8 = vsyncpa [#allocation3], 0
    %9 = vsyncpa [#allocation6], 0
    %10 = vsyncpa [#allocation4], 0
    // Predicated region
    $region2: #{tpu_custom_call.1} parent=1 // pred_check
      _
    $region3: #{tpu_custom_call.1} parent=1 // pred_check_branch
      %12 = sbr.rel (0) target = $region5
    $region4: #{tpu_custom_call.1} parent=1 // pred_region
      %s14 = ssub.s32 64, 64
      %15 = vsyncadd [#allocation3], %s14
      %s17 = sshll.u32 [#allocation2], 4
      %s18 = int_to_ptr.vmem [resolvable:$true] %s17
      %20 = dma.hbm_to_vmem [thread:$0]  %s0, 64, %s18, [#allocation3]
    $region5: #{tpu_custom_call.1} parent=1 // pred_fallthru
      _
    // Predicated region
    $region6: #{tpu_custom_call.1} parent=1 // pred_check
      _
    $region7: #{tpu_custom_call.1} parent=1 // pred_check_branch
      %22 = sbr.rel (0) target = $region9
    $region8: #{tpu_custom_call.1} parent=1 // pred_region
      %s24 = ssub.s32 1024, 1024
      %25 = vsyncadd [#allocation6], %s24
      %s26 = sshll.u32 [#allocation5], 4
      %s27 = int_to_ptr.vmem [resolvable:$true] %s26
      %32 = dma.hbm_to_vmem [thread:$0]  %s1, 1024, %s27, [#allocation6], 64, 64, 4
    $region9: #{tpu_custom_call.1} parent=1 // pred_fallthru
      _
    // Predicated region
    $region10: #{tpu_custom_call.1} parent=1 // pred_check
      _
    $region11: #{tpu_custom_call.1} parent=1 // pred_check_branch
      %34 = sbr.rel (0) target = $region13
    $region12: #{tpu_custom_call.1} parent=1 // pred_region
      _
    $region13: #{tpu_custom_call.1} parent=1 // pred_fallthru
      _
    // Predicated region
    $region14: #{tpu_custom_call.1} parent=1 // pred_check
      _
    $region15: #{tpu_custom_call.1} parent=1 // pred_check_branch
      %36 = sbr.rel (0) target = $region17
    $region16: #{tpu_custom_call.1} parent=1 // pred_region
      %37 = dma.done [#allocation3], 64
    $region17: #{tpu_custom_call.1} parent=1 // pred_fallthru
      _
    // Predicated region
    $region18: #{tpu_custom_call.1} parent=1 // pred_check
      _
    $region19: #{tpu_custom_call.1} parent=1 // pred_check_branch
      %39 = sbr.rel (0) target = $region21
    $region20: #{tpu_custom_call.1} parent=1 // pred_region
      %40 = dma.done [#allocation6], 1024
    $region21: #{tpu_custom_call.1} parent=1 // pred_fallthru
      _
    %v42 = vld [vmem:[#allocation2] sm:$0xf]
    %v43 = vld [vmem:[#allocation5] sm:$0xf]
    %v44 = vld [vmem:[#allocation5 + $0x4] sm:$0xf]
    %v45 = vld [vmem:[#allocation5 + $0x8] sm:$0xf]
    %v46 = vld [vmem:[#allocation5 + $0xc] sm:$0xf]
    %v47 = vld [vmem:[#allocation5 + $0x10] sm:$0xf]
    %v48 = vld [vmem:[#allocation5 + $0x14] sm:$0xf]
    %v49 = vld [vmem:[#allocation5 + $0x18] sm:$0xf]
    %v50 = vld [vmem:[#allocation5 + $0x1c] sm:$0xf]
    %v51 = vld [vmem:[#allocation5 + $0x20] sm:$0xf]
    %v52 = vld [vmem:[#allocation5 + $0x24] sm:$0xf]
    %v53 = vld [vmem:[#allocation5 + $0x28] sm:$0xf]
    %v54 = vld [vmem:[#allocation5 + $0x2c] sm:$0xf]
    %v55 = vld [vmem:[#allocation5 + $0x30] sm:$0xf]
    %v56 = vld [vmem:[#allocation5 + $0x34] sm:$0xf]
    %v57 = vld [vmem:[#allocation5 + $0x38] sm:$0xf]
    %v58 = vld [vmem:[#allocation5 + $0x3c] sm:$0xf]
    %v59 = vld [vmem:[%s2] sm:$0x1]
    %v61 = vlaneseq
    %v62 = vshrl.u32 %v61, 7
    %v63 = vsub.s32 0, %v62
    %v64 = vrot.slane %v59, %v63
    %v82 = vunpack.c.l.b16 %v43
    %v83 = vunpack.c.l.b16 %v44
    %v84 = vunpack.c.l.b16 %v45
    %v85 = vunpack.c.l.b16 %v46
    %v86 = vunpack.c.l.b16 %v47
    %v87 = vunpack.c.l.b16 %v48
    %v88 = vunpack.c.l.b16 %v49
    %v89 = vunpack.c.l.b16 %v50
    %v90 = vunpack.c.l.b16 %v51
    %v91 = vunpack.c.l.b16 %v52
    %v92 = vunpack.c.l.b16 %v53
    %v93 = vunpack.c.l.b16 %v54
    %v94 = vunpack.c.l.b16 %v55
    %v95 = vunpack.c.l.b16 %v56
    %v96 = vunpack.c.l.b16 %v57
    %v97 = vunpack.c.l.b16 %v58
    %v98 = vpack.c.b16 %v83, %v82
    %v99 = vpack.c.b16 %v85, %v84
    %v100 = vpack.c.b16 %v87, %v86
    %v101 = vpack.c.b16 %v89, %v88
    %v102 = vpack.c.b16 %v91, %v90
    %v103 = vpack.c.b16 %v93, %v92
    %v104 = vpack.c.b16 %v95, %v94
    %v105 = vpack.c.b16 %v97, %v96
    %114 = vmatprep.subr.bf16.mxu0 0
    %115 = vmatpush1.bf16.msra.mxu0 %v105
    %116 = vmatprep.subr.bf16.mxu0 0
    %117 = vmatpush1.bf16.msra.mxu0 %v104
    %118 = vmatprep.subr.bf16.mxu0 0
    %119 = vmatpush1.bf16.msra.mxu0 %v103
    %120 = vmatprep.subr.bf16.mxu0 0
    %121 = vmatpush1.bf16.msra.mxu0 %v102
    %122 = vmatprep.subr.bf16.mxu0 0
    %123 = vmatpush1.bf16.msra.mxu0 %v101
    %124 = vmatprep.subr.bf16.mxu0 0
    %125 = vmatpush1.bf16.msra.mxu0 %v100
    %126 = vmatprep.subr.bf16.mxu0 0
    %127 = vmatpush1.bf16.msra.mxu0 %v99
    %128 = vmatprep.subr.bf16.mxu0 0
    %129 = vmatpush1.bf16.msra.mxu0 %v98
    %130 = vmatprep.subr.bf16.mxu0 0
    %131 = vmatpush2.bf16.msra.mxu0 0
    %132 = vmatprep.subr.bf16.mxu0 0
    %133 = vmatpush2.bf16.msra.mxu0 0
    %134 = vmatprep.subr.bf16.mxu0 0
    %135 = vmatpush2.bf16.msra.mxu0 0
    %136 = vmatprep.subr.bf16.mxu0 0
    %137 = vmatpush2.bf16.msra.mxu0 0
    %138 = vmatprep.subr.bf16.mxu0 0
    %139 = vmatpush2.bf16.msra.mxu0 0
    %140 = vmatprep.subr.bf16.mxu0 0
    %141 = vmatpush2.bf16.msra.mxu0 0
    %142 = vmatprep.subr.bf16.mxu0 0
    %143 = vmatpush2.bf16.msra.mxu0 0
    %144 = vmatprep.subr.bf16.mxu0 0
    %145 = vmatpush2.bf16.msra.mxu0 0
    %146 = vmatprep.mubr.bf16.mxu0 0
    %147 = vmatmul.mubr.bf16.gmra.mxu0 %v42
    %v148 = vpop.f32.mrf.mxu0
    %v149 = vadd.f32 %v64, %v148
    %v150 = vpop.f32.mrf.mxu0
    %v151 = vpop.f32.mrf.mxu0
    %v152 = vpop.f32.mrf.mxu0
    %153 = vdwg.mxu0
    %154 = vst [vmem:[#allocation7] sm:$0xff] %v149
    // Predicated region
    $region22: #{tpu_custom_call.1} parent=1 // pred_check
      _
    $region23: #{tpu_custom_call.1} parent=1 // pred_check_branch
      %156 = sbr.rel (0) target = $region25
    $region24: #{tpu_custom_call.1} parent=1 // pred_region
      %s158 = ssub.s32 128, 128
      %159 = vsyncadd [#allocation4], %s158
      %s161 = sshll.u32 [#allocation7], 4
      %s162 = int_to_ptr.vmem [resolvable:$true] %s161
      %164 = dma.vmem_to_hbm [thread:$0]  %s162, 128, %s3, [#allocation4]
    $region25: #{tpu_custom_call.1} parent=1 // pred_fallthru
      _
    // Predicated region
    $region26: #{tpu_custom_call.1} parent=1 // pred_check
      _
    $region27: #{tpu_custom_call.1} parent=1 // pred_check_branch
      %166 = sbr.rel (0) target = $region29
    $region28: #{tpu_custom_call.1} parent=1 // pred_region
      %167 = dma.done [#allocation4], 128
    $region29: #{tpu_custom_call.1} parent=1 // pred_fallthru
      _
    %168 = vsyncpa [#allocation3], 1
    %169 = vsyncpa [#allocation6], 1
    %170 = vsyncpa [#allocation4], 1

</llo_original>
